<compile_context>
chip_gen: v6e
topology: v6e:2x2x1
jax: 0.10.0
libtpu: 0.0.40
codegen_flags: <defaults>
</compile_context>

<pallas_src>
import jax
import jax.numpy as jnp
from jax.experimental import pallas as pl
from jax.experimental.pallas import tpu as pltpu


def _round_up(n, m):
    return ((n + m - 1) // m) * m


def actor_kernel(x_ref, w1_ref, b1_ref, w2_ref, b2_ref, out_ref):
    # FC1: cast the f32 x tile to bf16 (free VPU work hidden under DMA),
    # MXU matmul with f32 accumulation, bias + ReLU in f32.
    x = x_ref[...].astype(jnp.bfloat16)
    h = jnp.dot(x, w1_ref[...], preferred_element_type=jnp.float32)
    h = jnp.maximum(h + b1_ref[...], 0.0)

    # FC3: (TB, hidden) @ (hidden, act_dim) -> logits, f32 accumulate/bias.
    logits = jnp.dot(h.astype(jnp.bfloat16), w2_ref[...],
                     preferred_element_type=jnp.float32) + b2_ref[...]

    # Numerically-stable row-wise softmax in f32. Exact divide (the kernel is
    # memory-bound, so the divide is free) => rows sum to exactly 1 for
    # downstream Categorical sampling / log-probs.
    m = jnp.max(logits, axis=-1, keepdims=True)
    e = jnp.exp(logits - m)
    denom = jnp.sum(e, axis=-1, keepdims=True)
    out_ref[...] = (e / denom).astype(out_ref.dtype)


def prepare_actor_params(w1, b1, w2, b2):
    """One-time parameter prep, hoisted out of the per-call path.

    w1: (obs_dim, 64) f32, b1: (64,) or (1, 64) f32,
    w2: (64, act_dim) f32, b2: (act_dim,) or (1, act_dim) f32.
    Returns bf16 MXU weights and 2D f32 bias rows, ready for actor_forward.
    """
    hidden = w1.shape[1]
    act_dim = w2.shape[1]
    return (w1.astype(jnp.bfloat16),
            jnp.asarray(b1, jnp.float32).reshape(1, hidden),
            w2.astype(jnp.bfloat16),
            jnp.asarray(b2, jnp.float32).reshape(1, act_dim))


def actor_forward(x, params, *, tile_b=4096):
    """x: (B, obs_dim) f32; params from prepare_actor_params().
    Returns (B, act_dim) f32 action probabilities."""
    w1, b1, w2, b2 = params
    B, obs_dim = x.shape
    hidden = w1.shape[1]
    act_dim = w2.shape[1]

    # Batch tile: single tile for tiny acting batches (pure-overhead regime);
    # otherwise aim for >= 2 grid steps (v7x megacore) capped at tile_b.
    # Ragged last tile handled by Pallas partial-block masking — no x/out
    # padding copies and no post-kernel slice.
    if B <= 256:
        tb = _round_up(B, 8)
    else:
        tb = max(8, min(tile_b, _round_up(pl.cdiv(B, 2), 8)))
    grid = (pl.cdiv(B, tb),)

    return pl.pallas_call(
        actor_kernel,
        out_shape=jax.ShapeDtypeStruct((B, act_dim), jnp.float32),
        grid_spec=pltpu.PrefetchScalarGridSpec(
            num_scalar_prefetch=0,
            grid=grid,
            in_specs=[
                pl.BlockSpec((tb, obs_dim), lambda i: (i, 0)),      # x tile (f32)
                pl.BlockSpec((obs_dim, hidden), lambda i: (0, 0)),  # W1 (resident)
                pl.BlockSpec((1, hidden), lambda i: (0, 0)),        # b1 (resident)
                pl.BlockSpec((hidden, act_dim), lambda i: (0, 0)),  # W2 (resident)
                pl.BlockSpec((1, act_dim), lambda i: (0, 0)),       # b2 (resident)
            ],
            out_specs=pl.BlockSpec((tb, act_dim), lambda i: (i, 0)),
        ),
        compiler_params=pltpu.CompilerParams(
            dimension_semantics=("parallel",),   # shards batch tiles across TCs on v7x
        ),
    )(x, w1, b1, w2, b2)


def init_actor_params(key, obs_dim, act_dim, hidden=64):
    """PyTorch-style uniform(-1/sqrt(fan_in), +1/sqrt(fan_in)) init.
    Weights returned already transposed to (in, out), all f32."""
    k1, k2, k3, k4 = jax.random.split(key, 4)
    bound1 = 1.0 / jnp.sqrt(obs_dim)
    bound2 = 1.0 / jnp.sqrt(hidden)
    w1 = jax.random.uniform(k1, (obs_dim, hidden), jnp.float32, -bound1, bound1)
    b1 = jax.random.uniform(k2, (1, hidden), jnp.float32, -bound1, bound1)
    w2 = jax.random.uniform(k3, (hidden, act_dim), jnp.float32, -bound2, bound2)
    b2 = jax.random.uniform(k4, (1, act_dim), jnp.float32, -bound2, bound2)
    return w1, b1, w2, b2


def _ref_f32(x, w1, b1, w2, b2):
    h = jnp.maximum(x @ w1 + b1, 0.0)
    return jax.nn.softmax(h @ w2 + b2, axis=-1)


def _ref_bf16(x, w1, b1, w2, b2):
    # Emulates the kernel's numerics: bf16 MXU inputs, f32 accumulation/softmax.
    h = jnp.dot(x.astype(jnp.bfloat16), w1.astype(jnp.bfloat16),
                preferred_element_type=jnp.float32) + b1
    h = jnp.maximum(h, 0.0)
    logits = jnp.dot(h.astype(jnp.bfloat16), w2.astype(jnp.bfloat16),
                     preferred_element_type=jnp.float32) + b2
    return jax.nn.softmax(logits, axis=-1)


if __name__ == "__main__":
    OBS_DIM, ACT_DIM = 16, 8
    key = jax.random.PRNGKey(0)
    kx, kp, kx2 = jax.random.split(key, 3)
    w1, b1, w2, b2 = init_actor_params(kp, OBS_DIM, ACT_DIM)

    # One-time weight prep (hoisted out of the per-call path).
    params = jax.tree_util.tree_map(jax.block_until_ready,
                                    prepare_actor_params(w1, b1, w2, b2))

    # --- Small toy batch (matches the PyTorch usage; single-tile fast path) ---
    B = 2
    x = jax.random.normal(kx, (B, OBS_DIM), jnp.float32)
    probs = jax.block_until_ready(actor_forward(x, params))
    assert probs.shape == (B, ACT_DIM)
    assert jnp.allclose(probs, _ref_bf16(x, w1, b1, w2, b2), atol=2e-3, rtol=2e-3)
    assert jnp.allclose(probs, _ref_f32(x, w1, b1, w2, b2), atol=3e-2, rtol=3e-2)
    assert jnp.allclose(jnp.sum(probs, axis=-1), 1.0, atol=1e-5)

    # --- Larger, non-multiple batch: exercises the multi-step grid + ragged
    #     last tile (partial-block masking) path ------------------------------
    B2 = 1000
    x2 = jax.random.normal(kx2, (B2, OBS_DIM), jnp.float32)
    probs2 = jax.block_until_ready(actor_forward(x2, params))
    assert probs2.shape == (B2, ACT_DIM)
    assert jnp.allclose(probs2, _ref_bf16(x2, w1, b1, w2, b2), atol=2e-3, rtol=2e-3)
    assert jnp.allclose(jnp.sum(probs2, axis=-1), 1.0, atol=1e-5)

    print("KERNEL_OK")
</pallas_src>

<mosaic_0001>
module attributes {stable_mosaic.version = 11 : i64} {
  func.func @actor_kernel(%arg0: i32, %arg1: memref<8x16xf32, #tpu.memory_space<vmem>>, %arg2: memref<16x64xbf16, #tpu.memory_space<vmem>>, %arg3: memref<1x64xf32, #tpu.memory_space<vmem>>, %arg4: memref<64x8xbf16, #tpu.memory_space<vmem>>, %arg5: memref<1x8xf32, #tpu.memory_space<vmem>>, %arg6: memref<8x8xf32, #tpu.memory_space<vmem>>) attributes {dimension_semantics = [#tpu.dimension_semantics<parallel>], iteration_bounds = array<i64: 1>, scalar_prefetch = 0 : i64, scratch_operands = 0 : i64, tpu.core_type = #tpu.core_type<tc>, window_params = [{transform_indices = @transform_0, window_bounds = array<i64: 8, 16>}, {pipeline_mode = #tpu.pipeline_mode<synchronous>, transform_indices = @transform_1, window_bounds = array<i64: 16, 64>}, {pipeline_mode = #tpu.pipeline_mode<synchronous>, transform_indices = @transform_2, window_bounds = array<i64: 1, 64>}, {pipeline_mode = #tpu.pipeline_mode<synchronous>, transform_indices = @transform_3, window_bounds = array<i64: 64, 8>}, {pipeline_mode = #tpu.pipeline_mode<synchronous>, transform_indices = @transform_4, window_bounds = array<i64: 1, 8>}, {transform_indices = @transform_5, window_bounds = array<i64: 8, 8>}]} {
    %c0 = arith.constant 0 : index
    %c0_0 = arith.constant 0 : index
    %0 = vector.load %arg1[%c0, %c0_0] : memref<8x16xf32, #tpu.memory_space<vmem>>, vector<8x16xf32>
    %1 = arith.truncf %0 : vector<8x16xf32> to vector<8x16xbf16>
    %c0_1 = arith.constant 0 : index
    %c0_2 = arith.constant 0 : index
    %2 = vector.load %arg2[%c0_1, %c0_2] : memref<16x64xbf16, #tpu.memory_space<vmem>>, vector<16x64xbf16>
    %cst = arith.constant dense<0.000000e+00> : vector<8x64xf32>
    %3 = tpu.matmul %1, %2, %cst {dimension_numbers = #tpu.dot_dimension_numbers<[1], [0], [0], [1], [0, 0, 1, 1], [], []>} : vector<8x16xbf16>, vector<16x64xbf16>, vector<8x64xf32> -> vector<8x64xf32>
    %c0_3 = arith.constant 0 : index
    %c0_4 = arith.constant 0 : index
    %4 = vector.load %arg3[%c0_3, %c0_4] : memref<1x64xf32, #tpu.memory_space<vmem>>, vector<1x64xf32>
    %5 = vector.broadcast %4 : vector<1x64xf32> to vector<8x64xf32>
    %6 = arith.addf %3, %5 : vector<8x64xf32>
    %cst_5 = arith.constant 0.000000e+00 : f32
    %7 = vector.broadcast %cst_5 : f32 to vector<8x64xf32>
    %8 = arith.maximumf %6, %7 : vector<8x64xf32>
    %9 = arith.truncf %8 : vector<8x64xf32> to vector<8x64xbf16>
    %c0_6 = arith.constant 0 : index
    %c0_7 = arith.constant 0 : index
    %10 = vector.load %arg4[%c0_6, %c0_7] : memref<64x8xbf16, #tpu.memory_space<vmem>>, vector<64x8xbf16>
    %cst_8 = arith.constant dense<0.000000e+00> : vector<8x8xf32>
    %11 = tpu.matmul %9, %10, %cst_8 {dimension_numbers = #tpu.dot_dimension_numbers<[1], [0], [0], [1], [0, 0, 1, 1], [], []>} : vector<8x64xbf16>, vector<64x8xbf16>, vector<8x8xf32> -> vector<8x8xf32>
    %c0_9 = arith.constant 0 : index
    %c0_10 = arith.constant 0 : index
    %12 = vector.load %arg5[%c0_9, %c0_10] : memref<1x8xf32, #tpu.memory_space<vmem>>, vector<1x8xf32>
    %13 = vector.broadcast %12 : vector<1x8xf32> to vector<8x8xf32>
    %14 = arith.addf %11, %13 : vector<8x8xf32>
    %cst_11 = arith.constant dense<0xFF800000> : vector<8xf32>
    %15 = vector.multi_reduction <maximumf>, %14, %cst_11 [1] : vector<8x8xf32> to vector<8xf32>
    %16 = vector.shape_cast %15 : vector<8xf32> to vector<8x1xf32>
    %17 = vector.broadcast %16 : vector<8x1xf32> to vector<8x8xf32>
    %18 = arith.subf %14, %17 : vector<8x8xf32>
    %19 = math.exp %18 : vector<8x8xf32>
    %cst_12 = arith.constant dense<0.000000e+00> : vector<8xf32>
    %20 = vector.multi_reduction <add>, %19, %cst_12 [1] : vector<8x8xf32> to vector<8xf32>
    %21 = vector.shape_cast %20 : vector<8xf32> to vector<8x1xf32>
    %22 = vector.broadcast %21 : vector<8x1xf32> to vector<8x8xf32>
    %23 = arith.divf %19, %22 : vector<8x8xf32>
    %c0_13 = arith.constant 0 : index
    %c0_14 = arith.constant 0 : index
    %24 = vector.load %arg6[%c0_13, %c0_14] : memref<8x8xf32, #tpu.memory_space<vmem>>, vector<8x8xf32>
    tpu.vector_store %arg6[%c0_13, %c0_14], %23 {strides = array<i32>} : memref<8x8xf32, #tpu.memory_space<vmem>>, vector<8x8xf32>,
    return
  }
  func.func @transform_0(%arg0: i32) -> (i32, i32) {
    %c0_i32 = arith.constant 0 : i32
    %c0_i32_0 = arith.constant 0 : i32
    return %arg0, %c0_i32 : i32, i32
  }
  func.func @transform_1(%arg0: i32) -> (i32, i32) {
    %c0_i32 = arith.constant 0 : i32
    %c0_i32_0 = arith.constant 0 : i32
    %c0_i32_1 = arith.constant 0 : i32
    return %c0_i32, %c0_i32_0 : i32, i32
  }
  func.func @transform_2(%arg0: i32) -> (i32, i32) {
    %c0_i32 = arith.constant 0 : i32
    %c0_i32_0 = arith.constant 0 : i32
    %c0_i32_1 = arith.constant 0 : i32
    return %c0_i32, %c0_i32_0 : i32, i32
  }
  func.func @transform_3(%arg0: i32) -> (i32, i32) {
    %c0_i32 = arith.constant 0 : i32
    %c0_i32_0 = arith.constant 0 : i32
    %c0_i32_1 = arith.constant 0 : i32
    return %c0_i32, %c0_i32_0 : i32, i32
  }
  func.func @transform_4(%arg0: i32) -> (i32, i32) {
    %c0_i32 = arith.constant 0 : i32
    %c0_i32_0 = arith.constant 0 : i32
    %c0_i32_1 = arith.constant 0 : i32
    return %c0_i32, %c0_i32_0 : i32, i32
  }
  func.func @transform_5(%arg0: i32) -> (i32, i32) {
    %c0_i32 = arith.constant 0 : i32
    %c0_i32_0 = arith.constant 0 : i32
    return %arg0, %c0_i32 : i32, i32
  }
}

</mosaic_0001>

<llo_original>
// kernel: tpu_custom_call.1
$region0: #{tpu_custom_call.1}
  #allocation0 [shape = 'u32[]', space=smem, size = 0x4, offset = 0x4, fixed_abs, tag = 'smem constant byte address 0x4 - core index']
  #allocation1 [shape = 'u32[144,128]{1,0:T(1,128)}', space=vmem, size = 0x12000, scoped, tag = 'internal scratch']
  %s0 = inlined_call_operand.vmem [shape: f32[2,16], index: 0, kind: input, shape index: {}]
  %s1 = inlined_call_operand.vmem [shape: bf16[16,64], index: 1, kind: input, shape index: {}]
  %s2 = inlined_call_operand.vmem [shape: f32[1,64], index: 2, kind: input, shape index: {}]
  %s3 = inlined_call_operand.vmem [shape: bf16[64,8], index: 3, kind: input, shape index: {}]
  %s4 = inlined_call_operand.vmem [shape: f32[1,8], index: 4, kind: input, shape index: {}]
  %s5 = inlined_call_operand.hbm [shape: f32[2,8], index: 5, kind: output, shape index: {}]
  %s6 = sld [smem:[#allocation0]]
  $region30: #{tpu_custom_call.1} parent=0
    _
  %s8 = ssub.s32 1, %s6
  %s9 = scalar_select 0, %s8, %s6
  $region1: #{tpu_custom_call.1} parent=0
    #allocation2 [shape = 'u8[4096]{0}', space=vmem, size = 0x1000, scoped, tag = 'output window, operand 0, single buffered']
    #allocation3 [shape = 's32[1]{0}', space=sflag, size = 0x4, scoped, tag = 'scoped memory for tpu_custom_call.1']
    %10 = vsyncpa [#allocation3], 0
    // Predicated region
    $region2: #{tpu_custom_call.1} parent=1 // pred_check
      _
    $region3: #{tpu_custom_call.1} parent=1 // pred_check_branch
      %12 = sbr.rel (0) target = $region5
    $region4: #{tpu_custom_call.1} parent=1 // pred_region
      _
    $region5: #{tpu_custom_call.1} parent=1 // pred_fallthru
      _
    // Predicated region
    $region6: #{tpu_custom_call.1} parent=1 // pred_check
      _
    $region7: #{tpu_custom_call.1} parent=1 // pred_check_branch
      %14 = sbr.rel (0) target = $region9
    $region8: #{tpu_custom_call.1} parent=1 // pred_region
      _
    $region9: #{tpu_custom_call.1} parent=1 // pred_fallthru
      _
    // Predicated region
    $region10: #{tpu_custom_call.1} parent=1 // pred_check
      _
    $region11: #{tpu_custom_call.1} parent=1 // pred_check_branch
      %16 = sbr.rel (0) target = $region13
    $region12: #{tpu_custom_call.1} parent=1 // pred_region
      _
    $region13: #{tpu_custom_call.1} parent=1 // pred_fallthru
      _
    // Predicated region
    $region14: #{tpu_custom_call.1} parent=1 // pred_check
      _
    $region15: #{tpu_custom_call.1} parent=1 // pred_check_branch
      %18 = sbr.rel (0) target = $region17
    $region16: #{tpu_custom_call.1} parent=1 // pred_region
      _
    $region17: #{tpu_custom_call.1} parent=1 // pred_fallthru
      _
    // Predicated region
    $region18: #{tpu_custom_call.1} parent=1 // pred_check
      _
    $region19: #{tpu_custom_call.1} parent=1 // pred_check_branch
      %20 = sbr.rel (0) target = $region21
    $region20: #{tpu_custom_call.1} parent=1 // pred_region
      _
    $region21: #{tpu_custom_call.1} parent=1 // pred_fallthru
      _
    %v22 = vld [vmem:[%s0] sm:$0xff]
    %v23 = vpack.c.bf16 %v22, %v22
    %v24 = vld [vmem:[%s1] sm:$0xf]
    %v25 = vld [vmem:[%s1 + $0x4] sm:$0xf]
    %v26 = vld [vmem:[%s2] sm:$0x1]
    %v28 = vlaneseq
    %v29 = vshrl.u32 %v28, 7
    %v30 = vsub.s32 0, %v29
    %v31 = vrot.slane %v26, %v30
    %v35 = vunpack.c.l.b16 %v24
    %v36 = vunpack.c.l.b16 %v25
    %v37 = vpack.c.b16 %v36, %v35
    %vm39 = vcmask 130048
    %v41 = vsel %vm39, %v23, 0
    %43 = vmatprep.subr.bf16.mxu0 0
    %44 = vmatpush1.bf16.msra.mxu0 0
    %45 = vmatprep.subr.bf16.mxu0 0
    %46 = vmatpush1.bf16.msra.mxu0 0
    %47 = vmatprep.subr.bf16.mxu0 0
    %48 = vmatpush1.bf16.msra.mxu0 0
    %49 = vmatprep.subr.bf16.mxu0 0
    %50 = vmatpush1.bf16.msra.mxu0 0
    %51 = vmatprep.subr.bf16.mxu0 0
    %52 = vmatpush1.bf16.msra.mxu0 0
    %53 = vmatprep.subr.bf16.mxu0 0
    %54 = vmatpush1.bf16.msra.mxu0 0
    %55 = vmatprep.subr.bf16.mxu0 0
    %56 = vmatpush1.bf16.msra.mxu0 0
    %57 = vmatprep.subr.bf16.mxu0 0
    %58 = vmatpush1.bf16.msra.mxu0 %v37
    %59 = vmatprep.subr.bf16.mxu0 0
    %60 = vmatpush2.bf16.msra.mxu0 0
    %61 = vmatprep.subr.bf16.mxu0 0
    %62 = vmatpush2.bf16.msra.mxu0 0
    %63 = vmatprep.subr.bf16.mxu0 0
    %64 = vmatpush2.bf16.msra.mxu0 0
    %65 = vmatprep.subr.bf16.mxu0 0
    %66 = vmatpush2.bf16.msra.mxu0 0
    %67 = vmatprep.subr.bf16.mxu0 0
    %68 = vmatpush2.bf16.msra.mxu0 0
    %69 = vmatprep.subr.bf16.mxu0 0
    %70 = vmatpush2.bf16.msra.mxu0 0
    %71 = vmatprep.subr.bf16.mxu0 0
    %72 = vmatpush2.bf16.msra.mxu0 0
    %73 = vmatprep.subr.bf16.mxu0 0
    %74 = vmatpush2.bf16.msra.mxu0 0
    %75 = vmatprep.mubr.bf16.mxu0 0
    %76 = vmatmul.mubr.bf16.gmra.mxu0 %v41
    %v77 = vpop.f32.mrf.mxu0
    %v78 = vadd.f32 %v31, %v77
    %v79 = vpop.f32.mrf.mxu0
    %v80 = vpop.f32.mrf.mxu0
    %v81 = vpop.f32.mrf.mxu0
    %82 = vdwg.mxu0
    %v83 = vmax.f32 %v78, 0.0
    %v84 = vpack.c.bf16 %v83, %v83
    %v85 = vld [vmem:[%s3] sm:$0xf]
    %v86 = vld [vmem:[%s3 + $0x4] sm:$0xf]
    %v87 = vld [vmem:[%s3 + $0x8] sm:$0xf]
    %v88 = vld [vmem:[%s3 + $0xc] sm:$0xf]
    %v89 = vld [vmem:[%s3 + $0x10] sm:$0xf]
    %v90 = vld [vmem:[%s3 + $0x14] sm:$0xf]
    %v91 = vld [vmem:[%s3 + $0x18] sm:$0xf]
    %v92 = vld [vmem:[%s3 + $0x1c] sm:$0xf]
    %v93 = vld [vmem:[%s4] sm:$0x1]
    %v95 = vlaneseq
    %v96 = vshrl.u32 %v95, 7
    %v97 = vsub.s32 0, %v96
    %v98 = vrot.slane %v93, %v97
    %v108 = vunpack.c.l.b16 %v85
    %v109 = vunpack.c.l.b16 %v86
    %v110 = vunpack.c.l.b16 %v87
    %v111 = vunpack.c.l.b16 %v88
    %v112 = vunpack.c.l.b16 %v89
    %v113 = vunpack.c.l.b16 %v90
    %v114 = vunpack.c.l.b16 %v91
    %v115 = vunpack.c.l.b16 %v92
    %v116 = vpack.c.b16 %v109, %v108
    %v117 = vpack.c.b16 %v111, %v110
    %v118 = vpack.c.b16 %v113, %v112
    %v119 = vpack.c.b16 %v115, %v114
    %vm124 = vcmask 523264
    %v126 = vsel %vm124, %v84, 0
    %128 = vmatprep.subr.bf16.mxu0 0
    %129 = vmatpush1.bf16.msra.mxu0 0
    %130 = vmatprep.subr.bf16.mxu0 0
    %131 = vmatpush1.bf16.msra.mxu0 0
    %132 = vmatprep.subr.bf16.mxu0 0
    %133 = vmatpush1.bf16.msra.mxu0 0
    %134 = vmatprep.subr.bf16.mxu0 0
    %135 = vmatpush1.bf16.msra.mxu0 0
    %136 = vmatprep.subr.bf16.mxu0 0
    %137 = vmatpush1.bf16.msra.mxu0 %v119
    %138 = vmatprep.subr.bf16.mxu0 0
    %139 = vmatpush1.bf16.msra.mxu0 %v118
    %140 = vmatprep.subr.bf16.mxu0 0
    %141 = vmatpush1.bf16.msra.mxu0 %v117
    %142 = vmatprep.subr.bf16.mxu0 0
    %143 = vmatpush1.bf16.msra.mxu0 %v116
    %144 = vmatprep.subr.bf16.mxu0 0
    %145 = vmatpush2.bf16.msra.mxu0 0
    %146 = vmatprep.subr.bf16.mxu0 0
    %147 = vmatpush2.bf16.msra.mxu0 0
    %148 = vmatprep.subr.bf16.mxu0 0
    %149 = vmatpush2.bf16.msra.mxu0 0
    %150 = vmatprep.subr.bf16.mxu0 0
    %151 = vmatpush2.bf16.msra.mxu0 0
    %152 = vmatprep.subr.bf16.mxu0 0
    %153 = vmatpush2.bf16.msra.mxu0 0
    %154 = vmatprep.subr.bf16.mxu0 0
    %155 = vmatpush2.bf16.msra.mxu0 0
    %156 = vmatprep.subr.bf16.mxu0 0
    %157 = vmatpush2.bf16.msra.mxu0 0
    %158 = vmatprep.subr.bf16.mxu0 0
    %159 = vmatpush2.bf16.msra.mxu0 0
    %160 = vmatprep.mubr.bf16.mxu0 0
    %161 = vmatmul.mubr.bf16.gmra.mxu0 %v126
    %v162 = vpop.f32.mrf.mxu0
    %v163 = vadd.f32 %v98, %v162
    %v164 = vpop.f32.mrf.mxu0
    %v165 = vpop.f32.mrf.mxu0
    %v166 = vpop.f32.mrf.mxu0
    %167 = vdwg.mxu0
    %vm168 = vcmask 64512
    %v169 = vsel %vm168, %v163, -inf
    %170 = vmax.xlane.f32.xlu0 %v169
    %v171 = vpop.xlane.xlu0 %170
    %v172 = vsub.f32 %v163, %v171
    %v173 = vmul.f32 %v172, 1.442695
    %v174 = vpow.pop %v173
    %v175 = vsel %vm168, %v174, 0.0
    %176 = vadd.xlane.f32.xlu0 %v175
    %v177 = vpop.xlane.xlu0 %176
    %v178 = vrcp.pop %v177
    %v179 = vmul.f32 %v174, %v178
    %180 = vst.msk [vmem:[#allocation2] sm:$0xff] %vm168, %v179
    // Predicated region
    $region22: #{tpu_custom_call.1} parent=1 // pred_check
      _
    $region23: #{tpu_custom_call.1} parent=1 // pred_check_branch
      %182 = sbr.rel (0) target = $region25
    $region24: #{tpu_custom_call.1} parent=1 // pred_region
      %s184 = ssub.s32 128, 32
      %185 = vsyncadd [#allocation3], %s184
      %s186 = sshll.u32 [#allocation2], 4
      %s187 = int_to_ptr.vmem [resolvable:$true] %s186
      %192 = dma.vmem_to_hbm [thread:$0]  %s187, 32, %s5, [#allocation3], 32, 32, 2
    $region25: #{tpu_custom_call.1} parent=1 // pred_fallthru
      _
    // Predicated region
    $region26: #{tpu_custom_call.1} parent=1 // pred_check
      _
    $region27: #{tpu_custom_call.1} parent=1 // pred_check_branch
      %194 = sbr.rel (0) target = $region29
    $region28: #{tpu_custom_call.1} parent=1 // pred_region
      %195 = dma.done [#allocation3], 128
    $region29: #{tpu_custom_call.1} parent=1 // pred_fallthru
      _
    %196 = vsyncpa [#allocation3], 1

</llo_original>
